<compile_context>
chip_gen: v6e
topology: v6e:2x2x1
jax: 0.10.0
libtpu: 0.0.40
codegen_flags: <defaults>
</compile_context>

<pallas_src>
import jax
import jax.numpy as jnp
from jax.experimental import pallas as pl
from jax.experimental.pallas import tpu as pltpu

_LANES = 128  # vreg lane width (last dim)


def _round_up(n, m):
    return ((n + m - 1) // m) * m


def _sublanes_for(dtype):
    """Sublane packing for the batch (second-to-last) dim of the given dtype."""
    isz = jnp.dtype(dtype).itemsize
    if isz >= 4:
        return 8
    if isz == 2:
        return 16
    return 32


def _pad2d(a, rows, cols):
    r, c = a.shape
    if r == rows and c == cols:
        return a
    return jnp.pad(a, ((0, rows - r), (0, cols - c)))


def _vmem_capacity_bytes():
    try:
        return int(pltpu.get_tpu_info().vmem_capacity_bytes)
    except Exception:
        return 64 << 20  # conservative: v7x per-TensorCore VMEM


def generator_kernel(x_ref, w1_ref, b1_ref, w2_ref, b2_ref, w3_ref, b3_ref, o_ref):
    """Fused 3-layer MLP forward for one (TB, features) batch tile.

    Matmuls accumulate in f32 on the MXU; bias add + LeakyReLU run in f32 on
    the VPU; intermediate activations are downcast to the weight dtype so the
    next matmul stays on the fast (bf16-capable) MXU path. x is cast on-chip
    so the wrapper never needs a cast-only HBM copy.
    """
    cd = w1_ref.dtype
    x = x_ref[...].astype(cd)

    # Layer 1: Linear + LeakyReLU(0.2)
    h = jnp.dot(x, w1_ref[...], preferred_element_type=jnp.float32)
    h = h + b1_ref[...]
    h = jnp.where(h > 0, h, 0.2 * h)

    # Layer 2: Linear + LeakyReLU(0.2)
    h = jnp.dot(h.astype(cd), w2_ref[...], preferred_element_type=jnp.float32)
    h = h + b2_ref[...]
    h = jnp.where(h > 0, h, 0.2 * h)

    # Layer 3: Linear (no activation)
    out = jnp.dot(h.astype(cd), w3_ref[...], preferred_element_type=jnp.float32)
    out = out + b3_ref[...]
    o_ref[...] = out.astype(o_ref.dtype)


def prepare_params(w1, b1, w2, b2, w3, b3, *, compute_dtype=jnp.bfloat16):
    """Pad feature dims to 128-lane multiples and cast weights to the MXU
    operand dtype ONCE. Padding is exact for this network: padded hidden units
    see zero weight + zero bias, LeakyReLU(0) = 0, so they contribute nothing.

    w1: (input_size, hidden_size),  b1: (1, hidden_size) or (hidden_size,)
    w2: (hidden_size, hidden_size), b2: like b1
    w3: (hidden_size, output_size), b3: (1, output_size) or (output_size,)
    Note: bf16 operands quantize x and all weights; accumulation, bias add and
    LeakyReLU stay f32. Use compute_dtype=jnp.float32 for tighter numerics
    (still default MXU precision, i.e. bf16 passes, unlike a true f32 GEMM).
    """
    cd = jnp.dtype(compute_dtype)
    d_in, d_hid = w1.shape
    d_out = w3.shape[1]
    d_in_p = _round_up(d_in, _LANES)
    d_hid_p = _round_up(d_hid, _LANES)
    d_out_p = _round_up(d_out, _LANES)

    def bias(b, cols):
        return _pad2d(b.astype(jnp.float32).reshape(1, -1), 1, cols)

    return dict(
        w1=_pad2d(w1.astype(cd), d_in_p, d_hid_p),
        b1=bias(b1, d_hid_p),
        w2=_pad2d(w2.astype(cd), d_hid_p, d_hid_p),
        b2=bias(b2, d_hid_p),
        w3=_pad2d(w3.astype(cd), d_hid_p, d_out_p),
        b3=bias(b3, d_out_p),
        dims=(d_in, d_hid, d_out),
        compute_dtype=cd,
    )


def generator_forward(x, params, *, block_batch=None, out_dtype=jnp.float32):
    """Fused Pallas forward.

    x:      (B, input_size)
    params: output of prepare_params (padded/cast once, reused across calls)
    returns (B, output_size) in out_dtype
    """
    w1p, b1p = params["w1"], params["b1"]
    w2p, b2p = params["w2"], params["b2"]
    w3p, b3p = params["w3"], params["b3"]
    d_in, d_hid, d_out = params["dims"]
    cd = params["compute_dtype"]

    B, d_in_x = x.shape
    assert d_in_x == d_in, f"x has {d_in_x} features, expected {d_in}"
    d_in_p, d_hid_p = w1p.shape
    d_out_p = w3p.shape[1]

    vmem_cap = _vmem_capacity_bytes()
    sub = _sublanes_for(cd)

    # Bigger batch tiles on 128-MiB-VMEM chips (v5e/v6e), tighter on v7x.
    if block_batch is None:
        block_batch = 512 if vmem_cap >= (96 << 20) else 256

    tb = min(_round_up(block_batch, sub), _round_up(B, sub))
    b_p = _round_up(B, tb)
    # Split a single-tile grid in two so the "parallel" axis can use both
    # TensorCores on v7x (each core keeps its own resident weight copy).
    if b_p // tb == 1 and b_p >= 2 * sub:
        tb = _round_up(b_p // 2, sub)
        b_p = _round_up(B, tb)
    n_tiles = b_p // tb

    # x handling: if x already matches the (b_p, d_in_p) tiling, pass it as-is
    # (cast happens in-kernel). If a padded copy is unavoidable, cast while
    # padding so the tile DMA is narrow.
    if B == b_p and d_in == d_in_p:
        xk = x
    else:
        xk = _pad2d(x.astype(cd), b_p, d_in_p)
    x_isz = jnp.dtype(xk.dtype).itemsize
    out_isz = jnp.dtype(out_dtype).itemsize

    # VMEM footprint: single-buffered resident weights + double-buffered x /
    # output tiles + f32 intermediates.
    weight_bytes = (
        (d_in_p * d_hid_p + d_hid_p * d_hid_p + d_hid_p * d_out_p) * cd.itemsize
        + (2 * d_hid_p + d_out_p) * 4
    )
    act_bytes = 2 * tb * (d_in_p * x_isz + d_out_p * out_isz)
    interm_bytes = 2 * tb * d_hid_p * 4
    est = weight_bytes + act_bytes + interm_bytes

    # Default scoped VMEM limit is 16 MiB on v5e and 32 MiB on v6e/v7x: use the
    # conservative 16 MiB trigger everywhere and cap below physical VMEM.
    vmem_limit = None
    if est > (16 << 20):
        vmem_limit = int(min(est + (4 << 20), int(vmem_cap * 0.8)))

    const = lambda i: (0, 0)  # weights / biases: same block every grid step (resident)

    def build_call(single_buffer_weights):
        def wspec(shape):
            if single_buffer_weights:
                return pl.BlockSpec(shape, const, pipeline_mode=pl.Buffered(1))
            return pl.BlockSpec(shape, const)

        return pl.pallas_call(
            generator_kernel,
            out_shape=jax.ShapeDtypeStruct((b_p, d_out_p), out_dtype),
            grid_spec=pltpu.PrefetchScalarGridSpec(
                num_scalar_prefetch=0,
                grid=(n_tiles,),
                in_specs=[
                    pl.BlockSpec((tb, d_in_p), lambda i: (i, 0)),
                    wspec((d_in_p, d_hid_p)),
                    wspec((1, d_hid_p)),
                    wspec((d_hid_p, d_hid_p)),
                    wspec((1, d_hid_p)),
                    wspec((d_hid_p, d_out_p)),
                    wspec((1, d_out_p)),
                ],
                out_specs=pl.BlockSpec((tb, d_out_p), lambda i: (i, 0)),
            ),
            compiler_params=pltpu.CompilerParams(
                dimension_semantics=("parallel",),  # batch tiles shard across TCs
                vmem_limit_bytes=vmem_limit,
            ),
        )

    try:
        out_padded = build_call(True)(xk, w1p, b1p, w2p, b2p, w3p, b3p)
        out_padded = jax.block_until_ready(out_padded)
    except Exception:
        # Fallback if this jax/Mosaic build rejects Buffered(1) weight specs.
        out_padded = build_call(False)(xk, w1p, b1p, w2p, b2p, w3p, b3p)

    if b_p != B or d_out_p != d_out:
        out_padded = out_padded[:B, :d_out]
    return out_padded


def init_params(key, input_size, hidden_size, output_size):
    """Deterministic init mimicking nn.Linear defaults (U(-1/sqrt(fan_in), 1/sqrt(fan_in)))."""
    ks = jax.random.split(key, 6)

    def linear(kw, kb, fan_in, fan_out):
        bound = 1.0 / jnp.sqrt(fan_in)
        w = jax.random.uniform(kw, (fan_in, fan_out), jnp.float32, -bound, bound)
        b = jax.random.uniform(kb, (1, fan_out), jnp.float32, -bound, bound)
        return w, b

    w1, b1 = linear(ks[0], ks[1], input_size, hidden_size)
    w2, b2 = linear(ks[2], ks[3], hidden_size, hidden_size)
    w3, b3 = linear(ks[4], ks[5], hidden_size, output_size)
    return w1, b1, w2, b2, w3, b3


def reference_forward(x, w1, b1, w2, b2, w3, b3):
    """Plain-JAX reference for sanity checking."""
    leaky = lambda v: jnp.where(v > 0, v, 0.2 * v)
    h = leaky(x @ w1 + b1)
    h = leaky(h @ w2 + b2)
    return h @ w3 + b3


if __name__ == "__main__":
    input_size, hidden_size, output_size = 16, 32, 16
    batch = 8

    key = jax.random.PRNGKey(0)
    k_x, k_p = jax.random.split(key)
    x = jax.random.normal(k_x, (batch, input_size), jnp.float32)
    raw_params = init_params(k_p, input_size, hidden_size, output_size)

    ref = reference_forward(x, *raw_params)

    # Default fast path: bf16 operands, f32 accumulation (native on v5e/v6e/v7x).
    params_bf16 = prepare_params(*raw_params)  # compute_dtype=bfloat16
    out = jax.block_until_ready(generator_forward(x, params_bf16))
    assert out.shape == (batch, output_size)
    assert jnp.allclose(out, ref, atol=2e-1, rtol=2e-1), "bf16 mismatch vs reference"

    # f32 operand path (tighter numerics; MXU still uses default matmul precision).
    params_f32 = prepare_params(*raw_params, compute_dtype=jnp.float32)
    out_f32 = jax.block_until_ready(generator_forward(x, params_f32))
    assert out_f32.shape == (batch, output_size)
    assert jnp.allclose(out_f32, ref, atol=1e-5, rtol=1e-5), "f32 mismatch vs reference"

    print("KERNEL_OK")
</pallas_src>

<mosaic_0001>
module attributes {stable_mosaic.version = 11 : i64} {
  func.func @generator_kernel(%arg0: i32, %arg1: memref<16x128xbf16, #tpu.memory_space<vmem>>, %arg2: memref<128x128xbf16, #tpu.memory_space<vmem>>, %arg3: memref<1x128xf32, #tpu.memory_space<vmem>>, %arg4: memref<128x128xbf16, #tpu.memory_space<vmem>>, %arg5: memref<1x128xf32, #tpu.memory_space<vmem>>, %arg6: memref<128x128xbf16, #tpu.memory_space<vmem>>, %arg7: memref<1x128xf32, #tpu.memory_space<vmem>>, %arg8: memref<16x128xf32, #tpu.memory_space<vmem>>) attributes {dimension_semantics = [#tpu.dimension_semantics<parallel>], iteration_bounds = array<i64: 1>, scalar_prefetch = 0 : i64, scratch_operands = 0 : i64, tpu.core_type = #tpu.core_type<tc>, window_params = [{transform_indices = @transform_0, window_bounds = array<i64: 16, 128>}, {pipeline_mode = #tpu.pipeline_mode<synchronous>, transform_indices = @transform_1, window_bounds = array<i64: 128, 128>}, {pipeline_mode = #tpu.pipeline_mode<synchronous>, transform_indices = @transform_2, window_bounds = array<i64: 1, 128>}, {pipeline_mode = #tpu.pipeline_mode<synchronous>, transform_indices = @transform_3, window_bounds = array<i64: 128, 128>}, {pipeline_mode = #tpu.pipeline_mode<synchronous>, transform_indices = @transform_4, window_bounds = array<i64: 1, 128>}, {pipeline_mode = #tpu.pipeline_mode<synchronous>, transform_indices = @transform_5, window_bounds = array<i64: 128, 128>}, {pipeline_mode = #tpu.pipeline_mode<synchronous>, transform_indices = @transform_6, window_bounds = array<i64: 1, 128>}, {transform_indices = @transform_7, window_bounds = array<i64: 16, 128>}]} {
    %c0 = arith.constant 0 : index
    %c0_0 = arith.constant 0 : index
    %0 = vector.load %arg1[%c0, %c0_0] : memref<16x128xbf16, #tpu.memory_space<vmem>>, vector<16x128xbf16>
    %c0_1 = arith.constant 0 : index
    %c0_2 = arith.constant 0 : index
    %1 = vector.load %arg2[%c0_1, %c0_2] : memref<128x128xbf16, #tpu.memory_space<vmem>>, vector<128x128xbf16>
    %cst = arith.constant dense<0.000000e+00> : vector<16x128xf32>
    %2 = tpu.matmul %0, %1, %cst {dimension_numbers = #tpu.dot_dimension_numbers<[1], [0], [0], [1], [0, 0, 1, 1], [], []>} : vector<16x128xbf16>, vector<128x128xbf16>, vector<16x128xf32> -> vector<16x128xf32>
    %c0_3 = arith.constant 0 : index
    %c0_4 = arith.constant 0 : index
    %3 = vector.load %arg3[%c0_3, %c0_4] : memref<1x128xf32, #tpu.memory_space<vmem>>, vector<1x128xf32>
    %4 = vector.broadcast %3 : vector<1x128xf32> to vector<16x128xf32>
    %5 = arith.addf %2, %4 : vector<16x128xf32>
    %cst_5 = arith.constant 0.000000e+00 : f32
    %6 = vector.broadcast %cst_5 : f32 to vector<16x128xf32>
    %7 = arith.cmpf ogt, %5, %6 : vector<16x128xf32>
    %cst_6 = arith.constant 2.000000e-01 : f32
    %8 = vector.broadcast %cst_6 : f32 to vector<16x128xf32>
    %9 = arith.mulf %8, %5 : vector<16x128xf32>
    %10 = arith.select %7, %5, %9 : vector<16x128xi1>, vector<16x128xf32>
    %11 = arith.truncf %10 : vector<16x128xf32> to vector<16x128xbf16>
    %c0_7 = arith.constant 0 : index
    %c0_8 = arith.constant 0 : index
    %12 = vector.load %arg4[%c0_7, %c0_8] : memref<128x128xbf16, #tpu.memory_space<vmem>>, vector<128x128xbf16>
    %cst_9 = arith.constant dense<0.000000e+00> : vector<16x128xf32>
    %13 = tpu.matmul %11, %12, %cst_9 {dimension_numbers = #tpu.dot_dimension_numbers<[1], [0], [0], [1], [0, 0, 1, 1], [], []>} : vector<16x128xbf16>, vector<128x128xbf16>, vector<16x128xf32> -> vector<16x128xf32>
    %c0_10 = arith.constant 0 : index
    %c0_11 = arith.constant 0 : index
    %14 = vector.load %arg5[%c0_10, %c0_11] : memref<1x128xf32, #tpu.memory_space<vmem>>, vector<1x128xf32>
    %15 = vector.broadcast %14 : vector<1x128xf32> to vector<16x128xf32>
    %16 = arith.addf %13, %15 : vector<16x128xf32>
    %cst_12 = arith.constant 0.000000e+00 : f32
    %17 = vector.broadcast %cst_12 : f32 to vector<16x128xf32>
    %18 = arith.cmpf ogt, %16, %17 : vector<16x128xf32>
    %cst_13 = arith.constant 2.000000e-01 : f32
    %19 = vector.broadcast %cst_13 : f32 to vector<16x128xf32>
    %20 = arith.mulf %19, %16 : vector<16x128xf32>
    %21 = arith.select %18, %16, %20 : vector<16x128xi1>, vector<16x128xf32>
    %22 = arith.truncf %21 : vector<16x128xf32> to vector<16x128xbf16>
    %c0_14 = arith.constant 0 : index
    %c0_15 = arith.constant 0 : index
    %23 = vector.load %arg6[%c0_14, %c0_15] : memref<128x128xbf16, #tpu.memory_space<vmem>>, vector<128x128xbf16>
    %cst_16 = arith.constant dense<0.000000e+00> : vector<16x128xf32>
    %24 = tpu.matmul %22, %23, %cst_16 {dimension_numbers = #tpu.dot_dimension_numbers<[1], [0], [0], [1], [0, 0, 1, 1], [], []>} : vector<16x128xbf16>, vector<128x128xbf16>, vector<16x128xf32> -> vector<16x128xf32>
    %c0_17 = arith.constant 0 : index
    %c0_18 = arith.constant 0 : index
    %25 = vector.load %arg7[%c0_17, %c0_18] : memref<1x128xf32, #tpu.memory_space<vmem>>, vector<1x128xf32>
    %26 = vector.broadcast %25 : vector<1x128xf32> to vector<16x128xf32>
    %27 = arith.addf %24, %26 : vector<16x128xf32>
    %c0_19 = arith.constant 0 : index
    %c0_20 = arith.constant 0 : index
    %28 = vector.load %arg8[%c0_19, %c0_20] : memref<16x128xf32, #tpu.memory_space<vmem>>, vector<16x128xf32>
    tpu.vector_store %arg8[%c0_19, %c0_20], %27 {strides = array<i32>} : memref<16x128xf32, #tpu.memory_space<vmem>>, vector<16x128xf32>,
    return
  }
  func.func @transform_0(%arg0: i32) -> (i32, i32) {
    %c0_i32 = arith.constant 0 : i32
    %c0_i32_0 = arith.constant 0 : i32
    return %arg0, %c0_i32 : i32, i32
  }
  func.func @transform_1(%arg0: i32) -> (i32, i32) {
    %c0_i32 = arith.constant 0 : i32
    %c0_i32_0 = arith.constant 0 : i32
    %c0_i32_1 = arith.constant 0 : i32
    return %c0_i32, %c0_i32_0 : i32, i32
  }
  func.func @transform_2(%arg0: i32) -> (i32, i32) {
    %c0_i32 = arith.constant 0 : i32
    %c0_i32_0 = arith.constant 0 : i32
    %c0_i32_1 = arith.constant 0 : i32
    return %c0_i32, %c0_i32_0 : i32, i32
  }
  func.func @transform_3(%arg0: i32) -> (i32, i32) {
    %c0_i32 = arith.constant 0 : i32
    %c0_i32_0 = arith.constant 0 : i32
    %c0_i32_1 = arith.constant 0 : i32
    return %c0_i32, %c0_i32_0 : i32, i32
  }
  func.func @transform_4(%arg0: i32) -> (i32, i32) {
    %c0_i32 = arith.constant 0 : i32
    %c0_i32_0 = arith.constant 0 : i32
    %c0_i32_1 = arith.constant 0 : i32
    return %c0_i32, %c0_i32_0 : i32, i32
  }
  func.func @transform_5(%arg0: i32) -> (i32, i32) {
    %c0_i32 = arith.constant 0 : i32
    %c0_i32_0 = arith.constant 0 : i32
    %c0_i32_1 = arith.constant 0 : i32
    return %c0_i32, %c0_i32_0 : i32, i32
  }
  func.func @transform_6(%arg0: i32) -> (i32, i32) {
    %c0_i32 = arith.constant 0 : i32
    %c0_i32_0 = arith.constant 0 : i32
    %c0_i32_1 = arith.constant 0 : i32
    return %c0_i32, %c0_i32_0 : i32, i32
  }
  func.func @transform_7(%arg0: i32) -> (i32, i32) {
    %c0_i32 = arith.constant 0 : i32
    %c0_i32_0 = arith.constant 0 : i32
    return %arg0, %c0_i32 : i32, i32
  }
}

module attributes {stable_mosaic.version = 11 : i64} {
  func.func @generator_kernel(%arg0: i32, %arg1: memref<16x128xbf16, #tpu.memory_space<vmem>>, %arg2: memref<128x128xbf16, #tpu.memory_space<vmem>>, %arg3: memref<1x128xf32, #tpu.memory_space<vmem>>, %arg4: memref<128x128xbf16, #tpu.memory_space<vmem>>, %arg5: memref<1x128xf32, #tpu.memory_space<vmem>>, %arg6: memref<128x128xbf16, #tpu.memory_space<vmem>>, %arg7: memref<1x128xf32, #tpu.memory_space<vmem>>, %arg8: memref<16x128xf32, #tpu.memory_space<vmem>>) attributes {dimension_semantics = [#tpu.dimension_semantics<parallel>], iteration_bounds = array<i64: 1>, scalar_prefetch = 0 : i64, scratch_operands = 0 : i64, tpu.core_type = #tpu.core_type<tc>, window_params = [{transform_indices = @transform_0, window_bounds = array<i64: 16, 128>}, {pipeline_mode = #tpu.pipeline_mode<synchronous>, transform_indices = @transform_1, window_bounds = array<i64: 128, 128>}, {pipeline_mode = #tpu.pipeline_mode<synchronous>, transform_indices = @transform_2, window_bounds = array<i64: 1, 128>}, {pipeline_mode = #tpu.pipeline_mode<synchronous>, transform_indices = @transform_3, window_bounds = array<i64: 128, 128>}, {pipeline_mode = #tpu.pipeline_mode<synchronous>, transform_indices = @transform_4, window_bounds = array<i64: 1, 128>}, {pipeline_mode = #tpu.pipeline_mode<synchronous>, transform_indices = @transform_5, window_bounds = array<i64: 128, 128>}, {pipeline_mode = #tpu.pipeline_mode<synchronous>, transform_indices = @transform_6, window_bounds = array<i64: 1, 128>}, {transform_indices = @transform_7, window_bounds = array<i64: 16, 128>}]} {
    %c0 = arith.constant 0 : index
    %c0_0 = arith.constant 0 : index
    %0 = vector.load %arg1[%c0, %c0_0] : memref<16x128xbf16, #tpu.memory_space<vmem>>, vector<16x128xbf16>
    %c0_1 = arith.constant 0 : index
    %c0_2 = arith.constant 0 : index
    %1 = vector.load %arg2[%c0_1, %c0_2] : memref<128x128xbf16, #tpu.memory_space<vmem>>, vector<128x128xbf16>
    %cst = arith.constant dense<0.000000e+00> : vector<16x128xf32>
    %2 = tpu.matmul %0, %1, %cst {dimension_numbers = #tpu.dot_dimension_numbers<[1], [0], [0], [1], [0, 0, 1, 1], [], []>} : vector<16x128xbf16>, vector<128x128xbf16>, vector<16x128xf32> -> vector<16x128xf32>
    %c0_3 = arith.constant 0 : index
    %c0_4 = arith.constant 0 : index
    %3 = vector.load %arg3[%c0_3, %c0_4] : memref<1x128xf32, #tpu.memory_space<vmem>>, vector<1x128xf32>
    %4 = vector.broadcast %3 : vector<1x128xf32> to vector<16x128xf32>
    %5 = arith.addf %2, %4 : vector<16x128xf32>
    %cst_5 = arith.constant 0.000000e+00 : f32
    %6 = vector.broadcast %cst_5 : f32 to vector<16x128xf32>
    %7 = arith.cmpf ogt, %5, %6 : vector<16x128xf32>
    %cst_6 = arith.constant 2.000000e-01 : f32
    %8 = vector.broadcast %cst_6 : f32 to vector<16x128xf32>
    %9 = arith.mulf %8, %5 : vector<16x128xf32>
    %10 = arith.select %7, %5, %9 : vector<16x128xi1>, vector<16x128xf32>
    %11 = arith.truncf %10 : vector<16x128xf32> to vector<16x128xbf16>
    %c0_7 = arith.constant 0 : index
    %c0_8 = arith.constant 0 : index
    %12 = vector.load %arg4[%c0_7, %c0_8] : memref<128x128xbf16, #tpu.memory_space<vmem>>, vector<128x128xbf16>
    %cst_9 = arith.constant dense<0.000000e+00> : vector<16x128xf32>
    %13 = tpu.matmul %11, %12, %cst_9 {dimension_numbers = #tpu.dot_dimension_numbers<[1], [0], [0], [1], [0, 0, 1, 1], [], []>} : vector<16x128xbf16>, vector<128x128xbf16>, vector<16x128xf32> -> vector<16x128xf32>
    %c0_10 = arith.constant 0 : index
    %c0_11 = arith.constant 0 : index
    %14 = vector.load %arg5[%c0_10, %c0_11] : memref<1x128xf32, #tpu.memory_space<vmem>>, vector<1x128xf32>
    %15 = vector.broadcast %14 : vector<1x128xf32> to vector<16x128xf32>
    %16 = arith.addf %13, %15 : vector<16x128xf32>
    %cst_12 = arith.constant 0.000000e+00 : f32
    %17 = vector.broadcast %cst_12 : f32 to vector<16x128xf32>
    %18 = arith.cmpf ogt, %16, %17 : vector<16x128xf32>
    %cst_13 = arith.constant 2.000000e-01 : f32
    %19 = vector.broadcast %cst_13 : f32 to vector<16x128xf32>
    %20 = arith.mulf %19, %16 : vector<16x128xf32>
    %21 = arith.select %18, %16, %20 : vector<16x128xi1>, vector<16x128xf32>
    %22 = arith.truncf %21 : vector<16x128xf32> to vector<16x128xbf16>
    %c0_14 = arith.constant 0 : index
    %c0_15 = arith.constant 0 : index
    %23 = vector.load %arg6[%c0_14, %c0_15] : memref<128x128xbf16, #tpu.memory_space<vmem>>, vector<128x128xbf16>
    %cst_16 = arith.constant dense<0.000000e+00> : vector<16x128xf32>
    %24 = tpu.matmul %22, %23, %cst_16 {dimension_numbers = #tpu.dot_dimension_numbers<[1], [0], [0], [1], [0, 0, 1, 1], [], []>} : vector<16x128xbf16>, vector<128x128xbf16>, vector<16x128xf32> -> vector<16x128xf32>
    %c0_17 = arith.constant 0 : index
    %c0_18 = arith.constant 0 : index
    %25 = vector.load %arg7[%c0_17, %c0_18] : memref<1x128xf32, #tpu.memory_space<vmem>>, vector<1x128xf32>
    %26 = vector.broadcast %25 : vector<1x128xf32> to vector<16x128xf32>
    %27 = arith.addf %24, %26 : vector<16x128xf32>
    %c0_19 = arith.constant 0 : index
    %c0_20 = arith.constant 0 : index
    %28 = vector.load %arg8[%c0_19, %c0_20] : memref<16x128xf32, #tpu.memory_space<vmem>>, vector<16x128xf32>
    tpu.vector_store %arg8[%c0_19, %c0_20], %27 {strides = array<i32>} : memref<16x128xf32, #tpu.memory_space<vmem>>, vector<16x128xf32>,
    return
  }
  func.func @transform_0(%arg0: i32) -> (i32, i32) {
    %c0_i32 = arith.constant 0 : i32
    %c0_i32_0 = arith.constant 0 : i32
    return %arg0, %c0_i32 : i32, i32
  }
  func.func @transform_1(%arg0: i32) -> (i32, i32) {
    %c0_i32 = arith.constant 0 : i32
    %c0_i32_0 = arith.constant 0 : i32
    %c0_i32_1 = arith.constant 0 : i32
    return %c0_i32, %c0_i32_0 : i32, i32
  }
  func.func @transform_2(%arg0: i32) -> (i32, i32) {
    %c0_i32 = arith.constant 0 : i32
    %c0_i32_0 = arith.constant 0 : i32
    %c0_i32_1 = arith.constant 0 : i32
    return %c0_i32, %c0_i32_0 : i32, i32
  }
  func.func @transform_3(%arg0: i32) -> (i32, i32) {
    %c0_i32 = arith.constant 0 : i32
    %c0_i32_0 = arith.constant 0 : i32
    %c0_i32_1 = arith.constant 0 : i32
    return %c0_i32, %c0_i32_0 : i32, i32
  }
  func.func @transform_4(%arg0: i32) -> (i32, i32) {
    %c0_i32 = arith.constant 0 : i32
    %c0_i32_0 = arith.constant 0 : i32
    %c0_i32_1 = arith.constant 0 : i32
    return %c0_i32, %c0_i32_0 : i32, i32
  }
  func.func @transform_5(%arg0: i32) -> (i32, i32) {
    %c0_i32 = arith.constant 0 : i32
    %c0_i32_0 = arith.constant 0 : i32
    %c0_i32_1 = arith.constant 0 : i32
    return %c0_i32, %c0_i32_0 : i32, i32
  }
  func.func @transform_6(%arg0: i32) -> (i32, i32) {
    %c0_i32 = arith.constant 0 : i32
    %c0_i32_0 = arith.constant 0 : i32
    %c0_i32_1 = arith.constant 0 : i32
    return %c0_i32, %c0_i32_0 : i32, i32
  }
  func.func @transform_7(%arg0: i32) -> (i32, i32) {
    %c0_i32 = arith.constant 0 : i32
    %c0_i32_0 = arith.constant 0 : i32
    return %arg0, %c0_i32 : i32, i32
  }
}

</mosaic_0001>

<llo_original>
// kernel: tpu_custom_call.1
$region0: #{tpu_custom_call.1}
  #allocation0 [shape = 'u32[]', space=smem, size = 0x4, offset = 0x4, fixed_abs, tag = 'smem constant byte address 0x4 - core index']
  #allocation1 [shape = 'u32[144,128]{1,0:T(1,128)}', space=vmem, size = 0x12000, scoped, tag = 'internal scratch']
  %s0 = inlined_call_operand.hbm [shape: bf16[16,128], index: 0, kind: input, shape index: {}]
  %s1 = inlined_call_operand.hbm [shape: bf16[128,128], index: 1, kind: input, shape index: {}]
  %s2 = inlined_call_operand.vmem [shape: f32[1,128], index: 2, kind: input, shape index: {}]
  %s3 = inlined_call_operand.hbm [shape: bf16[128,128], index: 3, kind: input, shape index: {}]
  %s4 = inlined_call_operand.vmem [shape: f32[1,128], index: 4, kind: input, shape index: {}]
  %s5 = inlined_call_operand.hbm [shape: bf16[128,128], index: 5, kind: input, shape index: {}]
  %s6 = inlined_call_operand.vmem [shape: f32[1,128], index: 6, kind: input, shape index: {}]
  %s7 = inlined_call_operand.hbm [shape: f32[16,128], index: 7, kind: output, shape index: {}]
  %s8 = sld [smem:[#allocation0]]
  $region54: #{tpu_custom_call.1} parent=0
    _
  %s10 = ssub.s32 1, %s8
  %s11 = scalar_select 0, %s10, %s8
  $region1: #{tpu_custom_call.1} parent=0
    #allocation2 [shape = 'u8[4096]{0}', space=vmem, size = 0x1000, scoped, tag = 'input window, operand 0, single buffered']
    #allocation3 [shape = 's32[1]{0}', space=sflag, size = 0x4, scoped, tag = 'scoped memory for tpu_custom_call.1']
    #allocation4 [shape = 's32[1]{0}', space=sflag, size = 0x4, scoped, tag = 'scoped memory for tpu_custom_call.1']
    #allocation5 [shape = 'u8[32768]{0}', space=vmem, size = 0x8000, scoped, tag = 'input window, operand 1, single buffered']
    #allocation6 [shape = 's32[1]{0}', space=sflag, size = 0x4, scoped, tag = 'scoped memory for tpu_custom_call.1']
    #allocation7 [shape = 'u8[32768]{0}', space=vmem, size = 0x8000, scoped, tag = 'input window, operand 3, single buffered']
    #allocation8 [shape = 'u8[32768]{0}', space=vmem, size = 0x8000, scoped, tag = 'input window, operand 5, single buffered']
    #allocation9 [shape = 's32[1]{0}', space=sflag, size = 0x4, scoped, tag = 'scoped memory for tpu_custom_call.1']
    #allocation10 [shape = 'u8[8192]{0}', space=vmem, size = 0x2000, scoped, tag = 'output window, operand 0, single buffered']
    %12 = vsyncpa [#allocation3], 0
    %13 = vsyncpa [#allocation6], 0
    %14 = vsyncpa [#allocation9], 0
    %15 = vsyncpa [#allocation4], 0
    // Predicated region
    $region2: #{tpu_custom_call.1} parent=1 // pred_check
      _
    $region3: #{tpu_custom_call.1} parent=1 // pred_check_branch
      %17 = sbr.rel (0) target = $region5
    $region4: #{tpu_custom_call.1} parent=1 // pred_region
      %s19 = ssub.s32 128, 128
      %20 = vsyncadd [#allocation3], %s19
      %s21 = sshll.u32 [#allocation2], 4
      %s22 = int_to_ptr.vmem [resolvable:$true] %s21
      %27 = dma.hbm_to_vmem [thread:$0]  %s0, 128, %s22, [#allocation3], 64, 64, 4
    $region5: #{tpu_custom_call.1} parent=1 // pred_fallthru
      _
    // Predicated region
    $region6: #{tpu_custom_call.1} parent=1 // pred_check
      _
    $region7: #{tpu_custom_call.1} parent=1 // pred_check_branch
      %29 = sbr.rel (0) target = $region9
    $region8: #{tpu_custom_call.1} parent=1 // pred_region
      %s31 = ssub.s32 1024, 1024
      %32 = vsyncadd [#allocation6], %s31
      %s33 = sshll.u32 [#allocation5], 4
      %s34 = int_to_ptr.vmem [resolvable:$true] %s33
      %39 = dma.hbm_to_vmem [thread:$0]  %s1, 1024, %s34, [#allocation6], 64, 64, 4
    $region9: #{tpu_custom_call.1} parent=1 // pred_fallthru
      _
    // Predicated region
    $region10: #{tpu_custom_call.1} parent=1 // pred_check
      _
    $region11: #{tpu_custom_call.1} parent=1 // pred_check_branch
      %41 = sbr.rel (0) target = $region13
    $region12: #{tpu_custom_call.1} parent=1 // pred_region
      _
    $region13: #{tpu_custom_call.1} parent=1 // pred_fallthru
      _
    // Predicated region
    $region14: #{tpu_custom_call.1} parent=1 // pred_check
      _
    $region15: #{tpu_custom_call.1} parent=1 // pred_check_branch
      %43 = sbr.rel (0) target = $region17
    $region16: #{tpu_custom_call.1} parent=1 // pred_region
      %s45 = ssub.s32 1024, 1024
      %46 = vsyncadd [#allocation6], %s45
      %s47 = sshll.u32 [#allocation7], 4
      %s48 = int_to_ptr.vmem [resolvable:$true] %s47
      %53 = dma.hbm_to_vmem [thread:$0]  %s3, 1024, %s48, [#allocation6], 64, 64, 4
    $region17: #{tpu_custom_call.1} parent=1 // pred_fallthru
      _
    // Predicated region
    $region18: #{tpu_custom_call.1} parent=1 // pred_check
      _
    $region19: #{tpu_custom_call.1} parent=1 // pred_check_branch
      %55 = sbr.rel (0) target = $region21
    $region20: #{tpu_custom_call.1} parent=1 // pred_region
      _
    $region21: #{tpu_custom_call.1} parent=1 // pred_fallthru
      _
    // Predicated region
    $region22: #{tpu_custom_call.1} parent=1 // pred_check
      _
    $region23: #{tpu_custom_call.1} parent=1 // pred_check_branch
      %57 = sbr.rel (0) target = $region25
    $region24: #{tpu_custom_call.1} parent=1 // pred_region
      %s59 = ssub.s32 1024, 1024
      %60 = vsyncadd [#allocation9], %s59
      %s61 = sshll.u32 [#allocation8], 4
      %s62 = int_to_ptr.vmem [resolvable:$true] %s61
      %67 = dma.hbm_to_vmem [thread:$0]  %s5, 1024, %s62, [#allocation9], 64, 64, 4
    $region25: #{tpu_custom_call.1} parent=1 // pred_fallthru
      _
    // Predicated region
    $region26: #{tpu_custom_call.1} parent=1 // pred_check
      _
    $region27: #{tpu_custom_call.1} parent=1 // pred_check_branch
      %69 = sbr.rel (0) target = $region29
    $region28: #{tpu_custom_call.1} parent=1 // pred_region
      _
    $region29: #{tpu_custom_call.1} parent=1 // pred_fallthru
      _
    // Predicated region
    $region30: #{tpu_custom_call.1} parent=1 // pred_check
      _
    $region31: #{tpu_custom_call.1} parent=1 // pred_check_branch
      %71 = sbr.rel (0) target = $region33
    $region32: #{tpu_custom_call.1} parent=1 // pred_region
      %72 = dma.done [#allocation3], 128
    $region33: #{tpu_custom_call.1} parent=1 // pred_fallthru
      _
    // Predicated region
    $region34: #{tpu_custom_call.1} parent=1 // pred_check
      _
    $region35: #{tpu_custom_call.1} parent=1 // pred_check_branch
      %74 = sbr.rel (0) target = $region37
    $region36: #{tpu_custom_call.1} parent=1 // pred_region
      %75 = dma.done [#allocation6], 1024
    $region37: #{tpu_custom_call.1} parent=1 // pred_fallthru
      _
    // Predicated region
    $region38: #{tpu_custom_call.1} parent=1 // pred_check
      _
    $region39: #{tpu_custom_call.1} parent=1 // pred_check_branch
      %77 = sbr.rel (0) target = $region41
    $region40: #{tpu_custom_call.1} parent=1 // pred_region
      %78 = dma.done [#allocation6], 1024
    $region41: #{tpu_custom_call.1} parent=1 // pred_fallthru
      _
    // Predicated region
    $region42: #{tpu_custom_call.1} parent=1 // pred_check
      _
    $region43: #{tpu_custom_call.1} parent=1 // pred_check_branch
      %80 = sbr.rel (0) target = $region45
    $region44: #{tpu_custom_call.1} parent=1 // pred_region
      %81 = dma.done [#allocation9], 1024
    $region45: #{tpu_custom_call.1} parent=1 // pred_fallthru
      _
    %v83 = vld [vmem:[#allocation2] sm:$0xf]
    %v84 = vld [vmem:[#allocation2 + $0x4] sm:$0xf]
    %v85 = vld [vmem:[#allocation5] sm:$0xf]
    %v86 = vld [vmem:[#allocation5 + $0x4] sm:$0xf]
    %v87 = vld [vmem:[#allocation5 + $0x8] sm:$0xf]
    %v88 = vld [vmem:[#allocation5 + $0xc] sm:$0xf]
    %v89 = vld [vmem:[#allocation5 + $0x10] sm:$0xf]
    %v90 = vld [vmem:[#allocation5 + $0x14] sm:$0xf]
    %v91 = vld [vmem:[#allocation5 + $0x18] sm:$0xf]
    %v92 = vld [vmem:[#allocation5 + $0x1c] sm:$0xf]
    %v93 = vld [vmem:[#allocation5 + $0x20] sm:$0xf]
    %v94 = vld [vmem:[#allocation5 + $0x24] sm:$0xf]
    %v95 = vld [vmem:[#allocation5 + $0x28] sm:$0xf]
    %v96 = vld [vmem:[#allocation5 + $0x2c] sm:$0xf]
    %v97 = vld [vmem:[#allocation5 + $0x30] sm:$0xf]
    %v98 = vld [vmem:[#allocation5 + $0x34] sm:$0xf]
    %v99 = vld [vmem:[#allocation5 + $0x38] sm:$0xf]
    %v100 = vld [vmem:[#allocation5 + $0x3c] sm:$0xf]
    %v101 = vld [vmem:[%s2] sm:$0x1]
    %v103 = vlaneseq
    %v104 = vshrl.u32 %v103, 7
    %v105 = vsub.s32 0, %v104
    %v106 = vrot.slane %v101, %v105
    %v110 = vunpack.c.l.b16 %v83
    %v111 = vunpack.c.l.b16 %v84
    %v112 = vpack.c.b16 %v111, %v110
    %v130 = vunpack.c.l.b16 %v85
    %v131 = vunpack.c.l.b16 %v86
    %v132 = vunpack.c.l.b16 %v87
    %v133 = vunpack.c.l.b16 %v88
    %v134 = vunpack.c.l.b16 %v89
    %v135 = vunpack.c.l.b16 %v90
    %v136 = vunpack.c.l.b16 %v91
    %v137 = vunpack.c.l.b16 %v92
    %v138 = vunpack.c.l.b16 %v93
    %v139 = vunpack.c.l.b16 %v94
    %v140 = vunpack.c.l.b16 %v95
    %v141 = vunpack.c.l.b16 %v96
    %v142 = vunpack.c.l.b16 %v97
    %v143 = vunpack.c.l.b16 %v98
    %v144 = vunpack.c.l.b16 %v99
    %v145 = vunpack.c.l.b16 %v100
    %v146 = vpack.c.b16 %v131, %v130
    %v147 = vpack.c.b16 %v133, %v132
    %v148 = vpack.c.b16 %v135, %v134
    %v149 = vpack.c.b16 %v137, %v136
    %v150 = vpack.c.b16 %v139, %v138
    %v151 = vpack.c.b16 %v141, %v140
    %v152 = vpack.c.b16 %v143, %v142
    %v153 = vpack.c.b16 %v145, %v144
    %162 = vmatprep.subr.bf16.mxu0 0
    %163 = vmatpush1.bf16.msra.mxu0 %v153
    %164 = vmatprep.subr.bf16.mxu0 0
    %165 = vmatpush1.bf16.msra.mxu0 %v152
    %166 = vmatprep.subr.bf16.mxu0 0
    %167 = vmatpush1.bf16.msra.mxu0 %v151
    %168 = vmatprep.subr.bf16.mxu0 0
    %169 = vmatpush1.bf16.msra.mxu0 %v150
    %170 = vmatprep.subr.bf16.mxu0 0
    %171 = vmatpush1.bf16.msra.mxu0 %v149
    %172 = vmatprep.subr.bf16.mxu0 0
    %173 = vmatpush1.bf16.msra.mxu0 %v148
    %174 = vmatprep.subr.bf16.mxu0 0
    %175 = vmatpush1.bf16.msra.mxu0 %v147
    %176 = vmatprep.subr.bf16.mxu0 0
    %177 = vmatpush1.bf16.msra.mxu0 %v146
    %178 = vmatprep.subr.bf16.mxu0 0
    %179 = vmatpush2.bf16.msra.mxu0 0
    %180 = vmatprep.subr.bf16.mxu0 0
    %181 = vmatpush2.bf16.msra.mxu0 0
    %182 = vmatprep.subr.bf16.mxu0 0
    %183 = vmatpush2.bf16.msra.mxu0 0
    %184 = vmatprep.subr.bf16.mxu0 0
    %185 = vmatpush2.bf16.msra.mxu0 0
    %186 = vmatprep.subr.bf16.mxu0 0
    %187 = vmatpush2.bf16.msra.mxu0 0
    %188 = vmatprep.subr.bf16.mxu0 0
    %189 = vmatpush2.bf16.msra.mxu0 0
    %190 = vmatprep.subr.bf16.mxu0 0
    %191 = vmatpush2.bf16.msra.mxu0 0
    %192 = vmatprep.subr.bf16.mxu0 0
    %193 = vmatpush2.bf16.msra.mxu0 0
    %194 = vmatprep.mubr.bf16.mxu0 0
    %195 = vmatmul.mubr.bf16.gmra.mxu0 %v112
    %v196 = vpop.f32.mrf.mxu0
    %v197 = vadd.f32 %v106, %v196
    %v198 = vpop.f32.mrf.mxu0
    %v199 = vpop.f32.mrf.mxu0
    %v200 = vadd.f32 %v106, %v199
    %v201 = vpop.f32.mrf.mxu0
    %202 = vdwg.mxu0
    %vm203 = vcmp.gt.f32.partialorder %v197, 0.0
    %vm204 = vcmp.gt.f32.partialorder %v200, 0.0
    %v205 = vmul.f32 %v197, 0.2
    %v206 = vmul.f32 %v200, 0.2
    %v207 = vsel %vm203, %v197, %v205
    %v208 = vsel %vm204, %v200, %v206
    %v209 = vpack.c.bf16 %v208, %v207
    %v210 = vld [vmem:[#allocation7] sm:$0xf]
    %v211 = vld [vmem:[#allocation7 + $0x4] sm:$0xf]
    %v212 = vld [vmem:[#allocation7 + $0x8] sm:$0xf]
    %v213 = vld [vmem:[#allocation7 + $0xc] sm:$0xf]
    %v214 = vld [vmem:[#allocation7 + $0x10] sm:$0xf]
    %v215 = vld [vmem:[#allocation7 + $0x14] sm:$0xf]
    %v216 = vld [vmem:[#allocation7 + $0x18] sm:$0xf]
    %v217 = vld [vmem:[#allocation7 + $0x1c] sm:$0xf]
    %v218 = vld [vmem:[#allocation7 + $0x20] sm:$0xf]
    %v219 = vld [vmem:[#allocation7 + $0x24] sm:$0xf]
    %v220 = vld [vmem:[#allocation7 + $0x28] sm:$0xf]
    %v221 = vld [vmem:[#allocation7 + $0x2c] sm:$0xf]
    %v222 = vld [vmem:[#allocation7 + $0x30] sm:$0xf]
    %v223 = vld [vmem:[#allocation7 + $0x34] sm:$0xf]
    %v224 = vld [vmem:[#allocation7 + $0x38] sm:$0xf]
    %v225 = vld [vmem:[#allocation7 + $0x3c] sm:$0xf]
    %v226 = vld [vmem:[%s4] sm:$0x1]
    %v228 = vlaneseq
    %v229 = vshrl.u32 %v228, 7
    %v230 = vsub.s32 0, %v229
    %v231 = vrot.slane %v226, %v230
    %v249 = vunpack.c.l.b16 %v210
    %v250 = vunpack.c.l.b16 %v211
    %v251 = vunpack.c.l.b16 %v212
    %v252 = vunpack.c.l.b16 %v213
    %v253 = vunpack.c.l.b16 %v214
    %v254 = vunpack.c.l.b16 %v215
    %v255 = vunpack.c.l.b16 %v216
    %v256 = vunpack.c.l.b16 %v217
    %v257 = vunpack.c.l.b16 %v218
    %v258 = vunpack.c.l.b16 %v219
    %v259 = vunpack.c.l.b16 %v220
    %v260 = vunpack.c.l.b16 %v221
    %v261 = vunpack.c.l.b16 %v222
    %v262 = vunpack.c.l.b16 %v223
    %v263 = vunpack.c.l.b16 %v224
    %v264 = vunpack.c.l.b16 %v225
    %v265 = vpack.c.b16 %v250, %v249
    %v266 = vpack.c.b16 %v252, %v251
    %v267 = vpack.c.b16 %v254, %v253
    %v268 = vpack.c.b16 %v256, %v255
    %v269 = vpack.c.b16 %v258, %v257
    %v270 = vpack.c.b16 %v260, %v259
    %v271 = vpack.c.b16 %v262, %v261
    %v272 = vpack.c.b16 %v264, %v263
    %281 = vmatprep.subr.bf16.mxu0 0
    %282 = vmatpush1.bf16.msra.mxu0 %v272
    %283 = vmatprep.subr.bf16.mxu0 0
    %284 = vmatpush1.bf16.msra.mxu0 %v271
    %285 = vmatprep.subr.bf16.mxu0 0
    %286 = vmatpush1.bf16.msra.mxu0 %v270
    %287 = vmatprep.subr.bf16.mxu0 0
    %288 = vmatpush1.bf16.msra.mxu0 %v269
    %289 = vmatprep.subr.bf16.mxu0 0
    %290 = vmatpush1.bf16.msra.mxu0 %v268
    %291 = vmatprep.subr.bf16.mxu0 0
    %292 = vmatpush1.bf16.msra.mxu0 %v267
    %293 = vmatprep.subr.bf16.mxu0 0
    %294 = vmatpush1.bf16.msra.mxu0 %v266
    %295 = vmatprep.subr.bf16.mxu0 0
    %296 = vmatpush1.bf16.msra.mxu0 %v265
    %297 = vmatprep.subr.bf16.mxu0 0
    %298 = vmatpush2.bf16.msra.mxu0 0
    %299 = vmatprep.subr.bf16.mxu0 0
    %300 = vmatpush2.bf16.msra.mxu0 0
    %301 = vmatprep.subr.bf16.mxu0 0
    %302 = vmatpush2.bf16.msra.mxu0 0
    %303 = vmatprep.subr.bf16.mxu0 0
    %304 = vmatpush2.bf16.msra.mxu0 0
    %305 = vmatprep.subr.bf16.mxu0 0
    %306 = vmatpush2.bf16.msra.mxu0 0
    %307 = vmatprep.subr.bf16.mxu0 0
    %308 = vmatpush2.bf16.msra.mxu0 0
    %309 = vmatprep.subr.bf16.mxu0 0
    %310 = vmatpush2.bf16.msra.mxu0 0
    %311 = vmatprep.subr.bf16.mxu0 0
    %312 = vmatpush2.bf16.msra.mxu0 0
    %313 = vmatprep.mubr.bf16.mxu0 0
    %314 = vmatmul.mubr.bf16.gmra.mxu0 %v209
    %v315 = vpop.f32.mrf.mxu0
    %v316 = vadd.f32 %v231, %v315
    %v317 = vpop.f32.mrf.mxu0
    %v318 = vpop.f32.mrf.mxu0
    %v319 = vadd.f32 %v231, %v318
    %v320 = vpop.f32.mrf.mxu0
    %321 = vdwg.mxu0
    %vm322 = vcmp.gt.f32.partialorder %v316, 0.0
    %vm323 = vcmp.gt.f32.partialorder %v319, 0.0
    %v324 = vmul.f32 %v316, 0.2
    %v325 = vmul.f32 %v319, 0.2
    %v326 = vsel %vm322, %v316, %v324
    %v327 = vsel %vm323, %v319, %v325
    %v328 = vpack.c.bf16 %v327, %v326
    %v329 = vld [vmem:[#allocation8] sm:$0xf]
    %v330 = vld [vmem:[#allocation8 + $0x4] sm:$0xf]
    %v331 = vld [vmem:[#allocation8 + $0x8] sm:$0xf]
    %v332 = vld [vmem:[#allocation8 + $0xc] sm:$0xf]
    %v333 = vld [vmem:[#allocation8 + $0x10] sm:$0xf]
    %v334 = vld [vmem:[#allocation8 + $0x14] sm:$0xf]
    %v335 = vld [vmem:[#allocation8 + $0x18] sm:$0xf]
    %v336 = vld [vmem:[#allocation8 + $0x1c] sm:$0xf]
    %v337 = vld [vmem:[#allocation8 + $0x20] sm:$0xf]
    %v338 = vld [vmem:[#allocation8 + $0x24] sm:$0xf]
    %v339 = vld [vmem:[#allocation8 + $0x28] sm:$0xf]
    %v340 = vld [vmem:[#allocation8 + $0x2c] sm:$0xf]
    %v341 = vld [vmem:[#allocation8 + $0x30] sm:$0xf]
    %v342 = vld [vmem:[#allocation8 + $0x34] sm:$0xf]
    %v343 = vld [vmem:[#allocation8 + $0x38] sm:$0xf]
    %v344 = vld [vmem:[#allocation8 + $0x3c] sm:$0xf]
    %v345 = vld [vmem:[%s6] sm:$0x1]
    %v347 = vlaneseq
    %v348 = vshrl.u32 %v347, 7
    %v349 = vsub.s32 0, %v348
    %v350 = vrot.slane %v345, %v349
    %v368 = vunpack.c.l.b16 %v329
    %v369 = vunpack.c.l.b16 %v330
    %v370 = vunpack.c.l.b16 %v331
    %v371 = vunpack.c.l.b16 %v332
    %v372 = vunpack.c.l.b16 %v333
    %v373 = vunpack.c.l.b16 %v334
    %v374 = vunpack.c.l.b16 %v335
    %v375 = vunpack.c.l.b16 %v336
    %v376 = vunpack.c.l.b16 %v337
    %v377 = vunpack.c.l.b16 %v338
    %v378 = vunpack.c.l.b16 %v339
    %v379 = vunpack.c.l.b16 %v340
    %v380 = vunpack.c.l.b16 %v341
    %v381 = vunpack.c.l.b16 %v342
    %v382 = vunpack.c.l.b16 %v343
    %v383 = vunpack.c.l.b16 %v344
    %v384 = vpack.c.b16 %v369, %v368
    %v385 = vpack.c.b16 %v371, %v370
    %v386 = vpack.c.b16 %v373, %v372
    %v387 = vpack.c.b16 %v375, %v374
    %v388 = vpack.c.b16 %v377, %v376
    %v389 = vpack.c.b16 %v379, %v378
    %v390 = vpack.c.b16 %v381, %v380
    %v391 = vpack.c.b16 %v383, %v382
    %400 = vmatprep.subr.bf16.mxu0 0
    %401 = vmatpush1.bf16.msra.mxu0 %v391
    %402 = vmatprep.subr.bf16.mxu0 0
    %403 = vmatpush1.bf16.msra.mxu0 %v390
    %404 = vmatprep.subr.bf16.mxu0 0
    %405 = vmatpush1.bf16.msra.mxu0 %v389
    %406 = vmatprep.subr.bf16.mxu0 0
    %407 = vmatpush1.bf16.msra.mxu0 %v388
    %408 = vmatprep.subr.bf16.mxu0 0
    %409 = vmatpush1.bf16.msra.mxu0 %v387
    %410 = vmatprep.subr.bf16.mxu0 0
    %411 = vmatpush1.bf16.msra.mxu0 %v386
    %412 = vmatprep.subr.bf16.mxu0 0
    %413 = vmatpush1.bf16.msra.mxu0 %v385
    %414 = vmatprep.subr.bf16.mxu0 0
    %415 = vmatpush1.bf16.msra.mxu0 %v384
    %416 = vmatprep.subr.bf16.mxu0 0
    %417 = vmatpush2.bf16.msra.mxu0 0
    %418 = vmatprep.subr.bf16.mxu0 0
    %419 = vmatpush2.bf16.msra.mxu0 0
    %420 = vmatprep.subr.bf16.mxu0 0
    %421 = vmatpush2.bf16.msra.mxu0 0
    %422 = vmatprep.subr.bf16.mxu0 0
    %423 = vmatpush2.bf16.msra.mxu0 0
    %424 = vmatprep.subr.bf16.mxu0 0
    %425 = vmatpush2.bf16.msra.mxu0 0
    %426 = vmatprep.subr.bf16.mxu0 0
    %427 = vmatpush2.bf16.msra.mxu0 0
    %428 = vmatprep.subr.bf16.mxu0 0
    %429 = vmatpush2.bf16.msra.mxu0 0
    %430 = vmatprep.subr.bf16.mxu0 0
    %431 = vmatpush2.bf16.msra.mxu0 0
    %432 = vmatprep.mubr.bf16.mxu0 0
    %433 = vmatmul.mubr.bf16.gmra.mxu0 %v328
    %v434 = vpop.f32.mrf.mxu0
    %v435 = vadd.f32 %v350, %v434
    %v436 = vpop.f32.mrf.mxu0
    %v437 = vpop.f32.mrf.mxu0
    %v438 = vadd.f32 %v350, %v437
    %v439 = vpop.f32.mrf.mxu0
    %440 = vdwg.mxu0
    %441 = vst [vmem:[#allocation10] sm:$0xff] %v435
    %442 = vst [vmem:[#allocation10 + $0x8] sm:$0xff] %v438
    // Predicated region
    $region46: #{tpu_custom_call.1} parent=1 // pred_check
      _
    $region47: #{tpu_custom_call.1} parent=1 // pred_check_branch
      %444 = sbr.rel (0) target = $region49
    $region48: #{tpu_custom_call.1} parent=1 // pred_region
      %s446 = ssub.s32 256, 256
      %447 = vsyncadd [#allocation4], %s446
      %s448 = sshll.u32 [#allocation10], 4
      %s449 = int_to_ptr.vmem [resolvable:$true] %s448
      %454 = dma.vmem_to_hbm [thread:$0]  %s449, 256, %s7, [#allocation4], 128, 128, 8
    $region49: #{tpu_custom_call.1} parent=1 // pred_fallthru
      _
    // Predicated region
    $region50: #{tpu_custom_call.1} parent=1 // pred_check
      _
    $region51: #{tpu_custom_call.1} parent=1 // pred_check_branch
      %456 = sbr.rel (0) target = $region53
    $region52: #{tpu_custom_call.1} parent=1 // pred_region
      %457 = dma.done [#allocation4], 256
    $region53: #{tpu_custom_call.1} parent=1 // pred_fallthru
      _
    %458 = vsyncpa [#allocation3], 1
    %459 = vsyncpa [#allocation6], 1
    %460 = vsyncpa [#allocation9], 1
    %461 = vsyncpa [#allocation4], 1

// kernel: tpu_custom_call.1
$region0: #{tpu_custom_call.1}
  #allocation0 [shape = 'u32[]', space=smem, size = 0x4, offset = 0x4, fixed_abs, tag = 'smem constant byte address 0x4 - core index']
  #allocation1 [shape = 'u32[144,128]{1,0:T(1,128)}', space=vmem, size = 0x12000, scoped, tag = 'internal scratch']
  %s0 = inlined_call_operand.hbm [shape: bf16[16,128], index: 0, kind: input, shape index: {}]
  %s1 = inlined_call_operand.hbm [shape: bf16[128,128], index: 1, kind: input, shape index: {}]
  %s2 = inlined_call_operand.vmem [shape: f32[1,128], index: 2, kind: input, shape index: {}]
  %s3 = inlined_call_operand.hbm [shape: bf16[128,128], index: 3, kind: input, shape index: {}]
  %s4 = inlined_call_operand.vmem [shape: f32[1,128], index: 4, kind: input, shape index: {}]
  %s5 = inlined_call_operand.hbm [shape: bf16[128,128], index: 5, kind: input, shape index: {}]
  %s6 = inlined_call_operand.vmem [shape: f32[1,128], index: 6, kind: input, shape index: {}]
  %s7 = inlined_call_operand.hbm [shape: f32[16,128], index: 7, kind: output, shape index: {}]
  %s8 = sld [smem:[#allocation0]]
  $region54: #{tpu_custom_call.1} parent=0
    _
  %s10 = ssub.s32 1, %s8
  %s11 = scalar_select 0, %s10, %s8
  $region1: #{tpu_custom_call.1} parent=0
    #allocation2 [shape = 'u8[4096]{0}', space=vmem, size = 0x1000, scoped, tag = 'input window, operand 0, single buffered']
    #allocation3 [shape = 's32[1]{0}', space=sflag, size = 0x4, scoped, tag = 'scoped memory for tpu_custom_call.1']
    #allocation4 [shape = 's32[1]{0}', space=sflag, size = 0x4, scoped, tag = 'scoped memory for tpu_custom_call.1']
    #allocation5 [shape = 'u8[32768]{0}', space=vmem, size = 0x8000, scoped, tag = 'input window, operand 1, single buffered']
    #allocation6 [shape = 's32[1]{0}', space=sflag, size = 0x4, scoped, tag = 'scoped memory for tpu_custom_call.1']
    #allocation7 [shape = 'u8[32768]{0}', space=vmem, size = 0x8000, scoped, tag = 'input window, operand 3, single buffered']
    #allocation8 [shape = 'u8[32768]{0}', space=vmem, size = 0x8000, scoped, tag = 'input window, operand 5, single buffered']
    #allocation9 [shape = 's32[1]{0}', space=sflag, size = 0x4, scoped, tag = 'scoped memory for tpu_custom_call.1']
    #allocation10 [shape = 'u8[8192]{0}', space=vmem, size = 0x2000, scoped, tag = 'output window, operand 0, single buffered']
    %12 = vsyncpa [#allocation3], 0
    %13 = vsyncpa [#allocation6], 0
    %14 = vsyncpa [#allocation9], 0
    %15 = vsyncpa [#allocation4], 0
    // Predicated region
    $region2: #{tpu_custom_call.1} parent=1 // pred_check
      _
    $region3: #{tpu_custom_call.1} parent=1 // pred_check_branch
      %17 = sbr.rel (0) target = $region5
    $region4: #{tpu_custom_call.1} parent=1 // pred_region
      %s19 = ssub.s32 128, 128
      %20 = vsyncadd [#allocation3], %s19
      %s21 = sshll.u32 [#allocation2], 4
      %s22 = int_to_ptr.vmem [resolvable:$true] %s21
      %27 = dma.hbm_to_vmem [thread:$0]  %s0, 128, %s22, [#allocation3], 64, 64, 4
    $region5: #{tpu_custom_call.1} parent=1 // pred_fallthru
      _
    // Predicated region
    $region6: #{tpu_custom_call.1} parent=1 // pred_check
      _
    $region7: #{tpu_custom_call.1} parent=1 // pred_check_branch
      %29 = sbr.rel (0) target = $region9
    $region8: #{tpu_custom_call.1} parent=1 // pred_region
      %s31 = ssub.s32 1024, 1024
      %32 = vsyncadd [#allocation6], %s31
      %s33 = sshll.u32 [#allocation5], 4
      %s34 = int_to_ptr.vmem [resolvable:$true] %s33
      %39 = dma.hbm_to_vmem [thread:$0]  %s1, 1024, %s34, [#allocation6], 64, 64, 4
    $region9: #{tpu_custom_call.1} parent=1 // pred_fallthru
      _
    // Predicated region
    $region10: #{tpu_custom_call.1} parent=1 // pred_check
      _
    $region11: #{tpu_custom_call.1} parent=1 // pred_check_branch
      %41 = sbr.rel (0) target = $region13
    $region12: #{tpu_custom_call.1} parent=1 // pred_region
      _
    $region13: #{tpu_custom_call.1} parent=1 // pred_fallthru
      _
    // Predicated region
    $region14: #{tpu_custom_call.1} parent=1 // pred_check
      _
    $region15: #{tpu_custom_call.1} parent=1 // pred_check_branch
      %43 = sbr.rel (0) target = $region17
    $region16: #{tpu_custom_call.1} parent=1 // pred_region
      %s45 = ssub.s32 1024, 1024
      %46 = vsyncadd [#allocation6], %s45
      %s47 = sshll.u32 [#allocation7], 4
      %s48 = int_to_ptr.vmem [resolvable:$true] %s47
      %53 = dma.hbm_to_vmem [thread:$0]  %s3, 1024, %s48, [#allocation6], 64, 64, 4
    $region17: #{tpu_custom_call.1} parent=1 // pred_fallthru
      _
    // Predicated region
    $region18: #{tpu_custom_call.1} parent=1 // pred_check
      _
    $region19: #{tpu_custom_call.1} parent=1 // pred_check_branch
      %55 = sbr.rel (0) target = $region21
    $region20: #{tpu_custom_call.1} parent=1 // pred_region
      _
    $region21: #{tpu_custom_call.1} parent=1 // pred_fallthru
      _
    // Predicated region
    $region22: #{tpu_custom_call.1} parent=1 // pred_check
      _
    $region23: #{tpu_custom_call.1} parent=1 // pred_check_branch
      %57 = sbr.rel (0) target = $region25
    $region24: #{tpu_custom_call.1} parent=1 // pred_region
      %s59 = ssub.s32 1024, 1024
      %60 = vsyncadd [#allocation9], %s59
      %s61 = sshll.u32 [#allocation8], 4
      %s62 = int_to_ptr.vmem [resolvable:$true] %s61
      %67 = dma.hbm_to_vmem [thread:$0]  %s5, 1024, %s62, [#allocation9], 64, 64, 4
    $region25: #{tpu_custom_call.1} parent=1 // pred_fallthru
      _
    // Predicated region
    $region26: #{tpu_custom_call.1} parent=1 // pred_check
      _
    $region27: #{tpu_custom_call.1} parent=1 // pred_check_branch
      %69 = sbr.rel (0) target = $region29
    $region28: #{tpu_custom_call.1} parent=1 // pred_region
      _
    $region29: #{tpu_custom_call.1} parent=1 // pred_fallthru
      _
    // Predicated region
    $region30: #{tpu_custom_call.1} parent=1 // pred_check
      _
    $region31: #{tpu_custom_call.1} parent=1 // pred_check_branch
      %71 = sbr.rel (0) target = $region33
    $region32: #{tpu_custom_call.1} parent=1 // pred_region
      %72 = dma.done [#allocation3], 128
    $region33: #{tpu_custom_call.1} parent=1 // pred_fallthru
      _
    // Predicated region
    $region34: #{tpu_custom_call.1} parent=1 // pred_check
      _
    $region35: #{tpu_custom_call.1} parent=1 // pred_check_branch
      %74 = sbr.rel (0) target = $region37
    $region36: #{tpu_custom_call.1} parent=1 // pred_region
      %75 = dma.done [#allocation6], 1024
    $region37: #{tpu_custom_call.1} parent=1 // pred_fallthru
      _
    // Predicated region
    $region38: #{tpu_custom_call.1} parent=1 // pred_check
      _
    $region39: #{tpu_custom_call.1} parent=1 // pred_check_branch
      %77 = sbr.rel (0) target = $region41
    $region40: #{tpu_custom_call.1} parent=1 // pred_region
      %78 = dma.done [#allocation6], 1024
    $region41: #{tpu_custom_call.1} parent=1 // pred_fallthru
      _
    // Predicated region
    $region42: #{tpu_custom_call.1} parent=1 // pred_check
      _
    $region43: #{tpu_custom_call.1} parent=1 // pred_check_branch
      %80 = sbr.rel (0) target = $region45
    $region44: #{tpu_custom_call.1} parent=1 // pred_region
      %81 = dma.done [#allocation9], 1024
    $region45: #{tpu_custom_call.1} parent=1 // pred_fallthru
      _
    %v83 = vld [vmem:[#allocation2] sm:$0xf]
    %v84 = vld [vmem:[#allocation2 + $0x4] sm:$0xf]
    %v85 = vld [vmem:[#allocation5] sm:$0xf]
    %v86 = vld [vmem:[#allocation5 + $0x4] sm:$0xf]
    %v87 = vld [vmem:[#allocation5 + $0x8] sm:$0xf]
    %v88 = vld [vmem:[#allocation5 + $0xc] sm:$0xf]
    %v89 = vld [vmem:[#allocation5 + $0x10] sm:$0xf]
    %v90 = vld [vmem:[#allocation5 + $0x14] sm:$0xf]
    %v91 = vld [vmem:[#allocation5 + $0x18] sm:$0xf]
    %v92 = vld [vmem:[#allocation5 + $0x1c] sm:$0xf]
    %v93 = vld [vmem:[#allocation5 + $0x20] sm:$0xf]
    %v94 = vld [vmem:[#allocation5 + $0x24] sm:$0xf]
    %v95 = vld [vmem:[#allocation5 + $0x28] sm:$0xf]
    %v96 = vld [vmem:[#allocation5 + $0x2c] sm:$0xf]
    %v97 = vld [vmem:[#allocation5 + $0x30] sm:$0xf]
    %v98 = vld [vmem:[#allocation5 + $0x34] sm:$0xf]
    %v99 = vld [vmem:[#allocation5 + $0x38] sm:$0xf]
    %v100 = vld [vmem:[#allocation5 + $0x3c] sm:$0xf]
    %v101 = vld [vmem:[%s2] sm:$0x1]
    %v103 = vlaneseq
    %v104 = vshrl.u32 %v103, 7
    %v105 = vsub.s32 0, %v104
    %v106 = vrot.slane %v101, %v105
    %v110 = vunpack.c.l.b16 %v83
    %v111 = vunpack.c.l.b16 %v84
    %v112 = vpack.c.b16 %v111, %v110
    %v130 = vunpack.c.l.b16 %v85
    %v131 = vunpack.c.l.b16 %v86
    %v132 = vunpack.c.l.b16 %v87
    %v133 = vunpack.c.l.b16 %v88
    %v134 = vunpack.c.l.b16 %v89
    %v135 = vunpack.c.l.b16 %v90
    %v136 = vunpack.c.l.b16 %v91
    %v137 = vunpack.c.l.b16 %v92
    %v138 = vunpack.c.l.b16 %v93
    %v139 = vunpack.c.l.b16 %v94
    %v140 = vunpack.c.l.b16 %v95
    %v141 = vunpack.c.l.b16 %v96
    %v142 = vunpack.c.l.b16 %v97
    %v143 = vunpack.c.l.b16 %v98
    %v144 = vunpack.c.l.b16 %v99
    %v145 = vunpack.c.l.b16 %v100
    %v146 = vpack.c.b16 %v131, %v130
    %v147 = vpack.c.b16 %v133, %v132
    %v148 = vpack.c.b16 %v135, %v134
    %v149 = vpack.c.b16 %v137, %v136
    %v150 = vpack.c.b16 %v139, %v138
    %v151 = vpack.c.b16 %v141, %v140
    %v152 = vpack.c.b16 %v143, %v142
    %v153 = vpack.c.b16 %v145, %v144
    %162 = vmatprep.subr.bf16.mxu0 0
    %163 = vmatpush1.bf16.msra.mxu0 %v153
    %164 = vmatprep.subr.bf16.mxu0 0
    %165 = vmatpush1.bf16.msra.mxu0 %v152
    %166 = vmatprep.subr.bf16.mxu0 0
    %167 = vmatpush1.bf16.msra.mxu0 %v151
    %168 = vmatprep.subr.bf16.mxu0 0
    %169 = vmatpush1.bf16.msra.mxu0 %v150
    %170 = vmatprep.subr.bf16.mxu0 0
    %171 = vmatpush1.bf16.msra.mxu0 %v149
    %172 = vmatprep.subr.bf16.mxu0 0
    %173 = vmatpush1.bf16.msra.mxu0 %v148
    %174 = vmatprep.subr.bf16.mxu0 0
    %175 = vmatpush1.bf16.msra.mxu0 %v147
    %176 = vmatprep.subr.bf16.mxu0 0
    %177 = vmatpush1.bf16.msra.mxu0 %v146
    %178 = vmatprep.subr.bf16.mxu0 0
    %179 = vmatpush2.bf16.msra.mxu0 0
    %180 = vmatprep.subr.bf16.mxu0 0
    %181 = vmatpush2.bf16.msra.mxu0 0
    %182 = vmatprep.subr.bf16.mxu0 0
    %183 = vmatpush2.bf16.msra.mxu0 0
    %184 = vmatprep.subr.bf16.mxu0 0
    %185 = vmatpush2.bf16.msra.mxu0 0
    %186 = vmatprep.subr.bf16.mxu0 0
    %187 = vmatpush2.bf16.msra.mxu0 0
    %188 = vmatprep.subr.bf16.mxu0 0
    %189 = vmatpush2.bf16.msra.mxu0 0
    %190 = vmatprep.subr.bf16.mxu0 0
    %191 = vmatpush2.bf16.msra.mxu0 0
    %192 = vmatprep.subr.bf16.mxu0 0
    %193 = vmatpush2.bf16.msra.mxu0 0
    %194 = vmatprep.mubr.bf16.mxu0 0
    %195 = vmatmul.mubr.bf16.gmra.mxu0 %v112
    %v196 = vpop.f32.mrf.mxu0
    %v197 = vadd.f32 %v106, %v196
    %v198 = vpop.f32.mrf.mxu0
    %v199 = vpop.f32.mrf.mxu0
    %v200 = vadd.f32 %v106, %v199
    %v201 = vpop.f32.mrf.mxu0
    %202 = vdwg.mxu0
    %vm203 = vcmp.gt.f32.partialorder %v197, 0.0
    %vm204 = vcmp.gt.f32.partialorder %v200, 0.0
    %v205 = vmul.f32 %v197, 0.2
    %v206 = vmul.f32 %v200, 0.2
    %v207 = vsel %vm203, %v197, %v205
    %v208 = vsel %vm204, %v200, %v206
    %v209 = vpack.c.bf16 %v208, %v207
    %v210 = vld [vmem:[#allocation7] sm:$0xf]
    %v211 = vld [vmem:[#allocation7 + $0x4] sm:$0xf]
    %v212 = vld [vmem:[#allocation7 + $0x8] sm:$0xf]
    %v213 = vld [vmem:[#allocation7 + $0xc] sm:$0xf]
    %v214 = vld [vmem:[#allocation7 + $0x10] sm:$0xf]
    %v215 = vld [vmem:[#allocation7 + $0x14] sm:$0xf]
    %v216 = vld [vmem:[#allocation7 + $0x18] sm:$0xf]
    %v217 = vld [vmem:[#allocation7 + $0x1c] sm:$0xf]
    %v218 = vld [vmem:[#allocation7 + $0x20] sm:$0xf]
    %v219 = vld [vmem:[#allocation7 + $0x24] sm:$0xf]
    %v220 = vld [vmem:[#allocation7 + $0x28] sm:$0xf]
    %v221 = vld [vmem:[#allocation7 + $0x2c] sm:$0xf]
    %v222 = vld [vmem:[#allocation7 + $0x30] sm:$0xf]
    %v223 = vld [vmem:[#allocation7 + $0x34] sm:$0xf]
    %v224 = vld [vmem:[#allocation7 + $0x38] sm:$0xf]
    %v225 = vld [vmem:[#allocation7 + $0x3c] sm:$0xf]
    %v226 = vld [vmem:[%s4] sm:$0x1]
    %v228 = vlaneseq
    %v229 = vshrl.u32 %v228, 7
    %v230 = vsub.s32 0, %v229
    %v231 = vrot.slane %v226, %v230
    %v249 = vunpack.c.l.b16 %v210
    %v250 = vunpack.c.l.b16 %v211
    %v251 = vunpack.c.l.b16 %v212
    %v252 = vunpack.c.l.b16 %v213
    %v253 = vunpack.c.l.b16 %v214
    %v254 = vunpack.c.l.b16 %v215
    %v255 = vunpack.c.l.b16 %v216
    %v256 = vunpack.c.l.b16 %v217
    %v257 = vunpack.c.l.b16 %v218
    %v258 = vunpack.c.l.b16 %v219
    %v259 = vunpack.c.l.b16 %v220
    %v260 = vunpack.c.l.b16 %v221
    %v261 = vunpack.c.l.b16 %v222
    %v262 = vunpack.c.l.b16 %v223
    %v263 = vunpack.c.l.b16 %v224
    %v264 = vunpack.c.l.b16 %v225
    %v265 = vpack.c.b16 %v250, %v249
    %v266 = vpack.c.b16 %v252, %v251
    %v267 = vpack.c.b16 %v254, %v253
    %v268 = vpack.c.b16 %v256, %v255
    %v269 = vpack.c.b16 %v258, %v257
    %v270 = vpack.c.b16 %v260, %v259
    %v271 = vpack.c.b16 %v262, %v261
    %v272 = vpack.c.b16 %v264, %v263
    %281 = vmatprep.subr.bf16.mxu0 0
    %282 = vmatpush1.bf16.msra.mxu0 %v272
    %283 = vmatprep.subr.bf16.mxu0 0
    %284 = vmatpush1.bf16.msra.mxu0 %v271
    %285 = vmatprep.subr.bf16.mxu0 0
    %286 = vmatpush1.bf16.msra.mxu0 %v270
    %287 = vmatprep.subr.bf16.mxu0 0
    %288 = vmatpush1.bf16.msra.mxu0 %v269
    %289 = vmatprep.subr.bf16.mxu0 0
    %290 = vmatpush1.bf16.msra.mxu0 %v268
    %291 = vmatprep.subr.bf16.mxu0 0
    %292 = vmatpush1.bf16.msra.mxu0 %v267
    %293 = vmatprep.subr.bf16.mxu0 0
    %294 = vmatpush1.bf16.msra.mxu0 %v266
    %295 = vmatprep.subr.bf16.mxu0 0
    %296 = vmatpush1.bf16.msra.mxu0 %v265
    %297 = vmatprep.subr.bf16.mxu0 0
    %298 = vmatpush2.bf16.msra.mxu0 0
    %299 = vmatprep.subr.bf16.mxu0 0
    %300 = vmatpush2.bf16.msra.mxu0 0
    %301 = vmatprep.subr.bf16.mxu0 0
    %302 = vmatpush2.bf16.msra.mxu0 0
    %303 = vmatprep.subr.bf16.mxu0 0
    %304 = vmatpush2.bf16.msra.mxu0 0
    %305 = vmatprep.subr.bf16.mxu0 0
    %306 = vmatpush2.bf16.msra.mxu0 0
    %307 = vmatprep.subr.bf16.mxu0 0
    %308 = vmatpush2.bf16.msra.mxu0 0
    %309 = vmatprep.subr.bf16.mxu0 0
    %310 = vmatpush2.bf16.msra.mxu0 0
    %311 = vmatprep.subr.bf16.mxu0 0
    %312 = vmatpush2.bf16.msra.mxu0 0
    %313 = vmatprep.mubr.bf16.mxu0 0
    %314 = vmatmul.mubr.bf16.gmra.mxu0 %v209
    %v315 = vpop.f32.mrf.mxu0
    %v316 = vadd.f32 %v231, %v315
    %v317 = vpop.f32.mrf.mxu0
    %v318 = vpop.f32.mrf.mxu0
    %v319 = vadd.f32 %v231, %v318
    %v320 = vpop.f32.mrf.mxu0
    %321 = vdwg.mxu0
    %vm322 = vcmp.gt.f32.partialorder %v316, 0.0
    %vm323 = vcmp.gt.f32.partialorder %v319, 0.0
    %v324 = vmul.f32 %v316, 0.2
    %v325 = vmul.f32 %v319, 0.2
    %v326 = vsel %vm322, %v316, %v324
    %v327 = vsel %vm323, %v319, %v325
    %v328 = vpack.c.bf16 %v327, %v326
    %v329 = vld [vmem:[#allocation8] sm:$0xf]
    %v330 = vld [vmem:[#allocation8 + $0x4] sm:$0xf]
    %v331 = vld [vmem:[#allocation8 + $0x8] sm:$0xf]
    %v332 = vld [vmem:[#allocation8 + $0xc] sm:$0xf]
    %v333 = vld [vmem:[#allocation8 + $0x10] sm:$0xf]
    %v334 = vld [vmem:[#allocation8 + $0x14] sm:$0xf]
    %v335 = vld [vmem:[#allocation8 + $0x18] sm:$0xf]
    %v336 = vld [vmem:[#allocation8 + $0x1c] sm:$0xf]
    %v337 = vld [vmem:[#allocation8 + $0x20] sm:$0xf]
    %v338 = vld [vmem:[#allocation8 + $0x24] sm:$0xf]
    %v339 = vld [vmem:[#allocation8 + $0x28] sm:$0xf]
    %v340 = vld [vmem:[#allocation8 + $0x2c] sm:$0xf]
    %v341 = vld [vmem:[#allocation8 + $0x30] sm:$0xf]
    %v342 = vld [vmem:[#allocation8 + $0x34] sm:$0xf]
    %v343 = vld [vmem:[#allocation8 + $0x38] sm:$0xf]
    %v344 = vld [vmem:[#allocation8 + $0x3c] sm:$0xf]
    %v345 = vld [vmem:[%s6] sm:$0x1]
    %v347 = vlaneseq
    %v348 = vshrl.u32 %v347, 7
    %v349 = vsub.s32 0, %v348
    %v350 = vrot.slane %v345, %v349
    %v368 = vunpack.c.l.b16 %v329
    %v369 = vunpack.c.l.b16 %v330
    %v370 = vunpack.c.l.b16 %v331
    %v371 = vunpack.c.l.b16 %v332
    %v372 = vunpack.c.l.b16 %v333
    %v373 = vunpack.c.l.b16 %v334
    %v374 = vunpack.c.l.b16 %v335
    %v375 = vunpack.c.l.b16 %v336
    %v376 = vunpack.c.l.b16 %v337
    %v377 = vunpack.c.l.b16 %v338
    %v378 = vunpack.c.l.b16 %v339
    %v379 = vunpack.c.l.b16 %v340
    %v380 = vunpack.c.l.b16 %v341
    %v381 = vunpack.c.l.b16 %v342
    %v382 = vunpack.c.l.b16 %v343
    %v383 = vunpack.c.l.b16 %v344
    %v384 = vpack.c.b16 %v369, %v368
    %v385 = vpack.c.b16 %v371, %v370
    %v386 = vpack.c.b16 %v373, %v372
    %v387 = vpack.c.b16 %v375, %v374
    %v388 = vpack.c.b16 %v377, %v376
    %v389 = vpack.c.b16 %v379, %v378
    %v390 = vpack.c.b16 %v381, %v380
    %v391 = vpack.c.b16 %v383, %v382
    %400 = vmatprep.subr.bf16.mxu0 0
    %401 = vmatpush1.bf16.msra.mxu0 %v391
    %402 = vmatprep.subr.bf16.mxu0 0
    %403 = vmatpush1.bf16.msra.mxu0 %v390
    %404 = vmatprep.subr.bf16.mxu0 0
    %405 = vmatpush1.bf16.msra.mxu0 %v389
    %406 = vmatprep.subr.bf16.mxu0 0
    %407 = vmatpush1.bf16.msra.mxu0 %v388
    %408 = vmatprep.subr.bf16.mxu0 0
    %409 = vmatpush1.bf16.msra.mxu0 %v387
    %410 = vmatprep.subr.bf16.mxu0 0
    %411 = vmatpush1.bf16.msra.mxu0 %v386
    %412 = vmatprep.subr.bf16.mxu0 0
    %413 = vmatpush1.bf16.msra.mxu0 %v385
    %414 = vmatprep.subr.bf16.mxu0 0
    %415 = vmatpush1.bf16.msra.mxu0 %v384
    %416 = vmatprep.subr.bf16.mxu0 0
    %417 = vmatpush2.bf16.msra.mxu0 0
    %418 = vmatprep.subr.bf16.mxu0 0
    %419 = vmatpush2.bf16.msra.mxu0 0
    %420 = vmatprep.subr.bf16.mxu0 0
    %421 = vmatpush2.bf16.msra.mxu0 0
    %422 = vmatprep.subr.bf16.mxu0 0
    %423 = vmatpush2.bf16.msra.mxu0 0
    %424 = vmatprep.subr.bf16.mxu0 0
    %425 = vmatpush2.bf16.msra.mxu0 0
    %426 = vmatprep.subr.bf16.mxu0 0
    %427 = vmatpush2.bf16.msra.mxu0 0
    %428 = vmatprep.subr.bf16.mxu0 0
    %429 = vmatpush2.bf16.msra.mxu0 0
    %430 = vmatprep.subr.bf16.mxu0 0
    %431 = vmatpush2.bf16.msra.mxu0 0
    %432 = vmatprep.mubr.bf16.mxu0 0
    %433 = vmatmul.mubr.bf16.gmra.mxu0 %v328
    %v434 = vpop.f32.mrf.mxu0
    %v435 = vadd.f32 %v350, %v434
    %v436 = vpop.f32.mrf.mxu0
    %v437 = vpop.f32.mrf.mxu0
    %v438 = vadd.f32 %v350, %v437
    %v439 = vpop.f32.mrf.mxu0
    %440 = vdwg.mxu0
    %441 = vst [vmem:[#allocation10] sm:$0xff] %v435
    %442 = vst [vmem:[#allocation10 + $0x8] sm:$0xff] %v438
    // Predicated region
    $region46: #{tpu_custom_call.1} parent=1 // pred_check
      _
    $region47: #{tpu_custom_call.1} parent=1 // pred_check_branch
      %444 = sbr.rel (0) target = $region49
    $region48: #{tpu_custom_call.1} parent=1 // pred_region
      %s446 = ssub.s32 256, 256
      %447 = vsyncadd [#allocation4], %s446
      %s448 = sshll.u32 [#allocation10], 4
      %s449 = int_to_ptr.vmem [resolvable:$true] %s448
      %454 = dma.vmem_to_hbm [thread:$0]  %s449, 256, %s7, [#allocation4], 128, 128, 8
    $region49: #{tpu_custom_call.1} parent=1 // pred_fallthru
      _
    // Predicated region
    $region50: #{tpu_custom_call.1} parent=1 // pred_check
      _
    $region51: #{tpu_custom_call.1} parent=1 // pred_check_branch
      %456 = sbr.rel (0) target = $region53
    $region52: #{tpu_custom_call.1} parent=1 // pred_region
      %457 = dma.done [#allocation4], 256
    $region53: #{tpu_custom_call.1} parent=1 // pred_fallthru
      _
    %458 = vsyncpa [#allocation3], 1
    %459 = vsyncpa [#allocation6], 1
    %460 = vsyncpa [#allocation9], 1
    %461 = vsyncpa [#allocation4], 1

</llo_original>
